<compile_context>
chip_gen: v5e
topology: v5e:2x2
jax: 0.10.0
libtpu: 0.0.40
codegen_flags: <defaults>
</compile_context>

<pallas_src>
import jax
import jax.numpy as jnp
from jax.experimental import pallas as pl
from jax.experimental.pallas import tpu as pltpu

HIDDEN = 64        # nn.Linear(state_dim, 64)
HIDDEN_PAD = 128   # hidden padded to a full lane width
HEAD_PAD = 128     # fused (actor | critic) head output padded to a full lane width


def _round_up(n, m):
    return ((n + m - 1) // m) * m


def actor_critic_kernel(x_ref, w1_ref, b1_ref, wh_ref, bh_ref, out_ref):
    # Cast x f32 -> bf16 in-kernel (cheap VPU op, hidden under the output DMA).
    x = x_ref[...].astype(w1_ref.dtype)
    # shared_fc + ReLU: bf16 MXU matmul with f32 accumulation; bias/ReLU in f32.
    h = jnp.dot(x, w1_ref[...], preferred_element_type=jnp.float32)
    h = jnp.maximum(h + b1_ref[...], 0.0)
    # Fused actor+critic head: single lane-dense matmul + single unmasked store.
    out = jnp.dot(h.astype(wh_ref.dtype), wh_ref[...],
                  preferred_element_type=jnp.float32) + bh_ref[...]
    out_ref[...] = out.astype(out_ref.dtype)   # bf16 store (halves writeback)


def prepare_params(params, compute_dtype=jnp.bfloat16):
    """One-time layout: transpose to [in,out], pad hidden->128, fuse heads,
    pad fused head output to 128 lanes, cast weights to the compute dtype.
    Call once and cache the result; do NOT call per step."""
    hidden, state_dim = params["w1"].shape          # [64, state_dim]
    action_dim = params["wa"].shape[0]
    assert hidden == HIDDEN and action_dim + 1 <= HEAD_PAD

    # Padded lanes of w1/b1 must stay exactly zero (relu(0+0)=0) and padded
    # rows of wh must stay zero -- this is what makes the padding exact.
    w1 = jnp.zeros((state_dim, HIDDEN_PAD), jnp.float32)
    w1 = w1.at[:, :hidden].set(params["w1"].T)
    b1 = jnp.zeros((1, HIDDEN_PAD), jnp.float32)
    b1 = b1.at[:, :hidden].set(params["b1"])

    wh = jnp.zeros((HIDDEN_PAD, HEAD_PAD), jnp.float32)
    wh = wh.at[:hidden, :action_dim].set(params["wa"].T)
    wh = wh.at[:hidden, action_dim:action_dim + 1].set(params["wc"].T)
    bh = jnp.zeros((1, HEAD_PAD), jnp.float32)
    bh = bh.at[:, :action_dim].set(params["ba"])
    bh = bh.at[:, action_dim:action_dim + 1].set(params["bc"])

    return {
        "w1": w1.astype(compute_dtype),   # [state_dim, 128] bf16
        "b1": b1,                         # [1, 128] f32
        "wh": wh.astype(compute_dtype),   # [128, 128] bf16
        "bh": bh,                         # [1, 128] f32
        "action_dim": action_dim,
        "state_dim": state_dim,
        "compute_dtype": compute_dtype,
    }


def _choose_tile(B, tm):
    """Pick the batch tile. Keep it a multiple of 8, cap by the batch, and
    keep the grid at >=2 steps when B allows so v7x's two TensorCores both
    get work (no-op on single-TC v5e/v6e)."""
    b8 = _round_up(B, 8)
    if b8 <= 8:
        return 8
    half = _round_up(pl.cdiv(b8, 2), 8)   # at most half the batch per tile
    return max(8, min(tm, half))


def actor_critic_forward(x, prepped, *, tm=1024):
    """x: [B, state_dim] f32. prepped: output of prepare_params.
    Returns (logits [B, action_dim] f32, value [B, 1] f32)."""
    B, state_dim = x.shape
    assert state_dim == prepped["state_dim"]
    action_dim = prepped["action_dim"]
    cdtype = prepped["compute_dtype"]

    tm_eff = _choose_tile(B, tm)
    Bp = _round_up(B, tm_eff)
    if Bp != B:
        # Negligible at state_dim=32; for Pong-scale inputs pick tm_eff | B or
        # pad the rollout buffer once offline instead of per call.
        x = jnp.pad(x, ((0, Bp - B), (0, 0)))

    grid = (Bp // tm_eff,)

    # Advisory cost hint so XLA schedules surrounding PPO ops around the call.
    flops = 2 * Bp * (state_dim * HIDDEN_PAD + HIDDEN_PAD * HEAD_PAD)
    bytes_accessed = (Bp * state_dim * 4                       # f32 x in
                      + (state_dim * HIDDEN_PAD + HIDDEN_PAD * HEAD_PAD) * 2
                      + (HIDDEN_PAD + HEAD_PAD) * 4            # biases
                      + Bp * HEAD_PAD * 2)                     # bf16 out
    cost = pl.CostEstimate(flops=flops, transcendentals=0,
                           bytes_accessed=bytes_accessed)

    out = pl.pallas_call(
        actor_critic_kernel,
        out_shape=jax.ShapeDtypeStruct((Bp, HEAD_PAD), cdtype),   # bf16 out
        grid_spec=pltpu.PrefetchScalarGridSpec(
            num_scalar_prefetch=0,
            grid=grid,
            in_specs=[
                # streamed / pipelined batch tiles (f32; cast to bf16 in-kernel)
                pl.BlockSpec((tm_eff, state_dim), lambda i: (i, 0)),
                # VMEM-resident weights & biases (constant index maps)
                pl.BlockSpec((state_dim, HIDDEN_PAD), lambda i: (0, 0)),
                pl.BlockSpec((1, HIDDEN_PAD), lambda i: (0, 0)),
                pl.BlockSpec((HIDDEN_PAD, HEAD_PAD), lambda i: (0, 0)),
                pl.BlockSpec((1, HEAD_PAD), lambda i: (0, 0)),
            ],
            out_specs=pl.BlockSpec((tm_eff, HEAD_PAD), lambda i: (i, 0)),
        ),
        compiler_params=pltpu.CompilerParams(
            dimension_semantics=("parallel",),
        ),
        cost_estimate=cost,
    )(x, prepped["w1"], prepped["b1"], prepped["wh"], prepped["bh"])

    logits = out[:B, :action_dim].astype(jnp.float32)
    value = out[:B, action_dim:action_dim + 1].astype(jnp.float32)
    return logits, value


def init_params(key, state_dim, action_dim, hidden=HIDDEN):
    """Deterministic synthetic init (PyTorch Linear shapes: weight [out, in])."""
    k1, k2, k3, k4, k5, k6 = jax.random.split(key, 6)

    def lin(kw, kb, out_d, in_d):
        bound = 1.0 / jnp.sqrt(in_d)
        w = jax.random.uniform(kw, (out_d, in_d), jnp.float32, -bound, bound)
        b = jax.random.uniform(kb, (out_d,), jnp.float32, -bound, bound)
        return w, b

    w1, b1 = lin(k1, k2, hidden, state_dim)
    wa, ba = lin(k3, k4, action_dim, hidden)
    wc, bc = lin(k5, k6, 1, hidden)
    return {"w1": w1, "b1": b1, "wa": wa, "ba": ba, "wc": wc, "bc": bc}


def _reference(x, params):
    h = jnp.maximum(x @ params["w1"].T + params["b1"], 0.0)
    logits = h @ params["wa"].T + params["ba"]
    value = h @ params["wc"].T + params["bc"]
    return logits, value


if __name__ == "__main__":
    key = jax.random.PRNGKey(0)
    kx, kx2, kx3, kp = jax.random.split(key, 4)

    state_dim, action_dim = 32, 8
    params = init_params(kp, state_dim, action_dim)
    prepped = prepare_params(params)   # one-time weight layout / fuse / pad / bf16

    # --- small single-tile case (PPO per-step path; launch-overhead dominated) ---
    B = 8
    x = jax.random.normal(kx, (B, state_dim), jnp.float32)
    logits, value = actor_critic_forward(x, prepped)
    jax.block_until_ready((logits, value))

    logits_ref, value_ref = _reference(x, params)
    assert logits.shape == (B, action_dim) and value.shape == (B, 1)
    # bf16 weights/activations/output with f32 accumulation: loose-ish tol.
    assert jnp.allclose(logits, logits_ref, atol=5e-2, rtol=5e-2)
    assert jnp.allclose(value, value_ref, atol=5e-2, rtol=5e-2)

    # --- ragged multi-tile case: exercises grid>=2, padding, resident weights ---
    B2 = 1000
    x2 = jax.random.normal(kx2, (B2, state_dim), jnp.float32)
    logits2, value2 = actor_critic_forward(x2, prepped)
    jax.block_until_ready((logits2, value2))

    logits2_ref, value2_ref = _reference(x2, params)
    assert logits2.shape == (B2, action_dim) and value2.shape == (B2, 1)
    assert jnp.allclose(logits2, logits2_ref, atol=5e-2, rtol=5e-2)
    assert jnp.allclose(value2, value2_ref, atol=5e-2, rtol=5e-2)

    # --- large rollout batch: exercises the big (1024-row) tiles ---
    B3 = 4096
    x3 = jax.random.normal(kx3, (B3, state_dim), jnp.float32)
    logits3, value3 = actor_critic_forward(x3, prepped)
    jax.block_until_ready((logits3, value3))

    logits3_ref, value3_ref = _reference(x3, params)
    assert logits3.shape == (B3, action_dim) and value3.shape == (B3, 1)
    assert jnp.allclose(logits3, logits3_ref, atol=5e-2, rtol=5e-2)
    assert jnp.allclose(value3, value3_ref, atol=5e-2, rtol=5e-2)

    print("KERNEL_OK")
</pallas_src>

<mosaic_0001>
module attributes {stable_mosaic.version = 11 : i64} {
  func.func @actor_critic_kernel(%arg0: i32, %arg1: memref<8x32xf32, #tpu.memory_space<vmem>>, %arg2: memref<32x128xbf16, #tpu.memory_space<vmem>>, %arg3: memref<1x128xf32, #tpu.memory_space<vmem>>, %arg4: memref<128x128xbf16, #tpu.memory_space<vmem>>, %arg5: memref<1x128xf32, #tpu.memory_space<vmem>>, %arg6: memref<8x128xbf16, #tpu.memory_space<vmem>>) attributes {dimension_semantics = [#tpu.dimension_semantics<parallel>], iteration_bounds = array<i64: 1>, scalar_prefetch = 0 : i64, scratch_operands = 0 : i64, tpu.core_type = #tpu.core_type<tc>, window_params = [{transform_indices = @transform_0, window_bounds = array<i64: 8, 32>}, {pipeline_mode = #tpu.pipeline_mode<synchronous>, transform_indices = @transform_1, window_bounds = array<i64: 32, 128>}, {pipeline_mode = #tpu.pipeline_mode<synchronous>, transform_indices = @transform_2, window_bounds = array<i64: 1, 128>}, {pipeline_mode = #tpu.pipeline_mode<synchronous>, transform_indices = @transform_3, window_bounds = array<i64: 128, 128>}, {pipeline_mode = #tpu.pipeline_mode<synchronous>, transform_indices = @transform_4, window_bounds = array<i64: 1, 128>}, {transform_indices = @transform_5, window_bounds = array<i64: 8, 128>}]} {
    %c0 = arith.constant 0 : index
    %c0_0 = arith.constant 0 : index
    %0 = vector.load %arg1[%c0, %c0_0] : memref<8x32xf32, #tpu.memory_space<vmem>>, vector<8x32xf32>
    %1 = arith.truncf %0 : vector<8x32xf32> to vector<8x32xbf16>
    %c0_1 = arith.constant 0 : index
    %c0_2 = arith.constant 0 : index
    %2 = vector.load %arg2[%c0_1, %c0_2] : memref<32x128xbf16, #tpu.memory_space<vmem>>, vector<32x128xbf16>
    %cst = arith.constant dense<0.000000e+00> : vector<8x128xf32>
    %3 = tpu.matmul %1, %2, %cst {dimension_numbers = #tpu.dot_dimension_numbers<[1], [0], [0], [1], [0, 0, 1, 1], [], []>} : vector<8x32xbf16>, vector<32x128xbf16>, vector<8x128xf32> -> vector<8x128xf32>
    %c0_3 = arith.constant 0 : index
    %c0_4 = arith.constant 0 : index
    %4 = vector.load %arg3[%c0_3, %c0_4] : memref<1x128xf32, #tpu.memory_space<vmem>>, vector<1x128xf32>
    %5 = vector.broadcast %4 : vector<1x128xf32> to vector<8x128xf32>
    %6 = arith.addf %3, %5 : vector<8x128xf32>
    %cst_5 = arith.constant 0.000000e+00 : f32
    %7 = vector.broadcast %cst_5 : f32 to vector<8x128xf32>
    %8 = arith.maximumf %6, %7 : vector<8x128xf32>
    %9 = arith.truncf %8 : vector<8x128xf32> to vector<8x128xbf16>
    %c0_6 = arith.constant 0 : index
    %c0_7 = arith.constant 0 : index
    %10 = vector.load %arg4[%c0_6, %c0_7] : memref<128x128xbf16, #tpu.memory_space<vmem>>, vector<128x128xbf16>
    %cst_8 = arith.constant dense<0.000000e+00> : vector<8x128xf32>
    %11 = tpu.matmul %9, %10, %cst_8 {dimension_numbers = #tpu.dot_dimension_numbers<[1], [0], [0], [1], [0, 0, 1, 1], [], []>} : vector<8x128xbf16>, vector<128x128xbf16>, vector<8x128xf32> -> vector<8x128xf32>
    %c0_9 = arith.constant 0 : index
    %c0_10 = arith.constant 0 : index
    %12 = vector.load %arg5[%c0_9, %c0_10] : memref<1x128xf32, #tpu.memory_space<vmem>>, vector<1x128xf32>
    %13 = vector.broadcast %12 : vector<1x128xf32> to vector<8x128xf32>
    %14 = arith.addf %11, %13 : vector<8x128xf32>
    %15 = arith.truncf %14 : vector<8x128xf32> to vector<8x128xbf16>
    %c0_11 = arith.constant 0 : index
    %c0_12 = arith.constant 0 : index
    %16 = vector.load %arg6[%c0_11, %c0_12] : memref<8x128xbf16, #tpu.memory_space<vmem>>, vector<8x128xbf16>
    tpu.vector_store %arg6[%c0_11, %c0_12], %15 {strides = array<i32>} : memref<8x128xbf16, #tpu.memory_space<vmem>>, vector<8x128xbf16>,
    return
  }
  func.func @transform_0(%arg0: i32) -> (i32, i32) {
    %c0_i32 = arith.constant 0 : i32
    %c0_i32_0 = arith.constant 0 : i32
    return %arg0, %c0_i32 : i32, i32
  }
  func.func @transform_1(%arg0: i32) -> (i32, i32) {
    %c0_i32 = arith.constant 0 : i32
    %c0_i32_0 = arith.constant 0 : i32
    %c0_i32_1 = arith.constant 0 : i32
    return %c0_i32, %c0_i32_0 : i32, i32
  }
  func.func @transform_2(%arg0: i32) -> (i32, i32) {
    %c0_i32 = arith.constant 0 : i32
    %c0_i32_0 = arith.constant 0 : i32
    %c0_i32_1 = arith.constant 0 : i32
    return %c0_i32, %c0_i32_0 : i32, i32
  }
  func.func @transform_3(%arg0: i32) -> (i32, i32) {
    %c0_i32 = arith.constant 0 : i32
    %c0_i32_0 = arith.constant 0 : i32
    %c0_i32_1 = arith.constant 0 : i32
    return %c0_i32, %c0_i32_0 : i32, i32
  }
  func.func @transform_4(%arg0: i32) -> (i32, i32) {
    %c0_i32 = arith.constant 0 : i32
    %c0_i32_0 = arith.constant 0 : i32
    %c0_i32_1 = arith.constant 0 : i32
    return %c0_i32, %c0_i32_0 : i32, i32
  }
  func.func @transform_5(%arg0: i32) -> (i32, i32) {
    %c0_i32 = arith.constant 0 : i32
    %c0_i32_0 = arith.constant 0 : i32
    return %arg0, %c0_i32 : i32, i32
  }
}

</mosaic_0001>

<llo_original>
// kernel: tpu_custom_call.1
$region0: #{tpu_custom_call.1}
  #allocation0 [shape = 'u32[]', space=smem, size = 0x4, offset = 0x4, fixed_abs, tag = 'smem constant byte address 0x4 - core index']
  #allocation1 [shape = 'u32[72,128]{1,0:T(1,128)}', space=vmem, size = 0x9000, scoped, tag = 'internal scratch']
  %s0 = inlined_call_operand.hbm [shape: f32[8,32], index: 0, kind: input, shape index: {}]
  %s1 = inlined_call_operand.hbm [shape: bf16[32,128], index: 1, kind: input, shape index: {}]
  %s2 = inlined_call_operand.vmem [shape: f32[1,128], index: 2, kind: input, shape index: {}]
  %s3 = inlined_call_operand.hbm [shape: bf16[128,128], index: 3, kind: input, shape index: {}]
  %s4 = inlined_call_operand.vmem [shape: f32[1,128], index: 4, kind: input, shape index: {}]
  %s5 = inlined_call_operand.hbm [shape: bf16[8,128], index: 5, kind: output, shape index: {}]
  %s6 = sld [smem:[#allocation0]]
  $region42: #{tpu_custom_call.1} parent=0
    _
  %s8 = ssub.s32 1, %s6
  %s9 = scalar_select 0, %s8, %s6
  $region1: #{tpu_custom_call.1} parent=0
    #allocation2 [shape = 'u8[4096]{0}', space=vmem, size = 0x1000, scoped, tag = 'input window, operand 0, single buffered']
    #allocation3 [shape = 's32[1]{0}', space=sflag, size = 0x4, scoped, tag = 'scoped memory for tpu_custom_call.1']
    #allocation4 [shape = 's32[1]{0}', space=sflag, size = 0x4, scoped, tag = 'scoped memory for tpu_custom_call.1']
    #allocation5 [shape = 'u8[8192]{0}', space=vmem, size = 0x2000, scoped, tag = 'input window, operand 1, single buffered']
    #allocation6 [shape = 's32[1]{0}', space=sflag, size = 0x4, scoped, tag = 'scoped memory for tpu_custom_call.1']
    #allocation7 [shape = 'u8[32768]{0}', space=vmem, size = 0x8000, scoped, tag = 'input window, operand 3, single buffered']
    #allocation8 [shape = 'u8[2048]{0}', space=vmem, size = 0x800, scoped, tag = 'output window, operand 0, single buffered']
    %10 = vsyncpa [#allocation3], 0
    %11 = vsyncpa [#allocation6], 0
    %12 = vsyncpa [#allocation4], 0
    // Predicated region
    $region2: #{tpu_custom_call.1} parent=1 // pred_check
      _
    $region3: #{tpu_custom_call.1} parent=1 // pred_check_branch
      %14 = sbr.rel (0) target = $region5
    $region4: #{tpu_custom_call.1} parent=1 // pred_region
      %16 = vsyncadd [#allocation3], 0
      %s18 = sshll.u32 %s0, 4
      %s19 = int_to_ptr.hbm [resolvable:$true] %s18
      %s20 = sshll.u32 [#allocation2], 4
      %s21 = int_to_ptr.vmem [resolvable:$true] %s20
      %23 = dma.hbm_to_vmem [thread:$0]  %s19, 128, %s21, [#allocation3]
    $region5: #{tpu_custom_call.1} parent=1 // pred_fallthru
      _
    // Predicated region
    $region6: #{tpu_custom_call.1} parent=1 // pred_check
      _
    $region7: #{tpu_custom_call.1} parent=1 // pred_check_branch
      %25 = sbr.rel (0) target = $region9
    $region8: #{tpu_custom_call.1} parent=1 // pred_region
      %27 = vsyncadd [#allocation6], 0
      %s28 = sshll.u32 %s1, 4
      %s29 = int_to_ptr.hbm [resolvable:$true] %s28
      %s30 = sshll.u32 [#allocation5], 4
      %s31 = int_to_ptr.vmem [resolvable:$true] %s30
      %36 = dma.hbm_to_vmem [thread:$0]  %s29, 256, %s31, [#allocation6], 64, 64, 4
    $region9: #{tpu_custom_call.1} parent=1 // pred_fallthru
      _
    // Predicated region
    $region10: #{tpu_custom_call.1} parent=1 // pred_check
      _
    $region11: #{tpu_custom_call.1} parent=1 // pred_check_branch
      %38 = sbr.rel (0) target = $region13
    $region12: #{tpu_custom_call.1} parent=1 // pred_region
      _
    $region13: #{tpu_custom_call.1} parent=1 // pred_fallthru
      _
    // Predicated region
    $region14: #{tpu_custom_call.1} parent=1 // pred_check
      _
    $region15: #{tpu_custom_call.1} parent=1 // pred_check_branch
      %40 = sbr.rel (0) target = $region17
    $region16: #{tpu_custom_call.1} parent=1 // pred_region
      %42 = vsyncadd [#allocation6], 0
      %s43 = sshll.u32 %s3, 4
      %s44 = int_to_ptr.hbm [resolvable:$true] %s43
      %s45 = sshll.u32 [#allocation7], 4
      %s46 = int_to_ptr.vmem [resolvable:$true] %s45
      %51 = dma.hbm_to_vmem [thread:$0]  %s44, 1024, %s46, [#allocation6], 64, 64, 4
    $region17: #{tpu_custom_call.1} parent=1 // pred_fallthru
      _
    // Predicated region
    $region18: #{tpu_custom_call.1} parent=1 // pred_check
      _
    $region19: #{tpu_custom_call.1} parent=1 // pred_check_branch
      %53 = sbr.rel (0) target = $region21
    $region20: #{tpu_custom_call.1} parent=1 // pred_region
      _
    $region21: #{tpu_custom_call.1} parent=1 // pred_fallthru
      _
    // Predicated region
    $region22: #{tpu_custom_call.1} parent=1 // pred_check
      _
    $region23: #{tpu_custom_call.1} parent=1 // pred_check_branch
      %55 = sbr.rel (0) target = $region25
    $region24: #{tpu_custom_call.1} parent=1 // pred_region
      %57 = dma.done [#allocation3], 128
    $region25: #{tpu_custom_call.1} parent=1 // pred_fallthru
      _
    // Predicated region
    $region26: #{tpu_custom_call.1} parent=1 // pred_check
      _
    $region27: #{tpu_custom_call.1} parent=1 // pred_check_branch
      %59 = sbr.rel (0) target = $region29
    $region28: #{tpu_custom_call.1} parent=1 // pred_region
      %61 = dma.done [#allocation6], 256
    $region29: #{tpu_custom_call.1} parent=1 // pred_fallthru
      _
    // Predicated region
    $region30: #{tpu_custom_call.1} parent=1 // pred_check
      _
    $region31: #{tpu_custom_call.1} parent=1 // pred_check_branch
      %63 = sbr.rel (0) target = $region33
    $region32: #{tpu_custom_call.1} parent=1 // pred_region
      %65 = dma.done [#allocation6], 1024
    $region33: #{tpu_custom_call.1} parent=1 // pred_fallthru
      _
    %v67 = vld [vmem:[#allocation2] sm:$0xff]
    %v68 = vpack.c.bf16 %v67, %v67
    %v69 = vld [vmem:[#allocation5] sm:$0xf]
    %v70 = vld [vmem:[#allocation5 + $0x4] sm:$0xf]
    %v71 = vld [vmem:[#allocation5 + $0x8] sm:$0xf]
    %v72 = vld [vmem:[#allocation5 + $0xc] sm:$0xf]
    %v73 = vld [vmem:[%s2] sm:$0x1]
    %v75 = vperm.slane %v73, 0
    %v81 = vunpack.c.l.b16 %v69
    %v82 = vunpack.c.l.b16 %v70
    %v83 = vunpack.c.l.b16 %v71
    %v84 = vunpack.c.l.b16 %v72
    %v85 = vpack.c.b16 %v82, %v81
    %v86 = vpack.c.b16 %v84, %v83
    %vm89 = vcmask 261120
    %v91 = vsel %vm89, %v68, 0
    %93 = vmatpush.bf16.msra.mxu0 0
    %94 = vmatpush.bf16.msra.mxu0 0
    %95 = vmatpush.bf16.msra.mxu0 0
    %96 = vmatpush.bf16.msra.mxu0 0
    %97 = vmatpush.bf16.msra.mxu0 0
    %98 = vmatpush.bf16.msra.mxu0 0
    %99 = vmatpush.bf16.msra.mxu0 %v86
    %100 = vmatpush.bf16.msra.mxu0 %v85
    %101 = vmatmul.bf16.gmra.mxu0 %v91
    %v102 = vpop.f32.mrf.mxu0
    %v103 = vadd.f32 %v75, %v102
    %v104 = vpop.f32.mrf.mxu0
    %105 = vdwg.mxu0
    %v106 = vmax.f32 %v103, 0.0
    %v107 = vpack.c.bf16 %v106, %v106
    %v108 = vld [vmem:[#allocation7] sm:$0xf]
    %v109 = vld [vmem:[#allocation7 + $0x4] sm:$0xf]
    %v110 = vld [vmem:[#allocation7 + $0x8] sm:$0xf]
    %v111 = vld [vmem:[#allocation7 + $0xc] sm:$0xf]
    %v112 = vld [vmem:[#allocation7 + $0x10] sm:$0xf]
    %v113 = vld [vmem:[#allocation7 + $0x14] sm:$0xf]
    %v114 = vld [vmem:[#allocation7 + $0x18] sm:$0xf]
    %v115 = vld [vmem:[#allocation7 + $0x1c] sm:$0xf]
    %v116 = vld [vmem:[#allocation7 + $0x20] sm:$0xf]
    %v117 = vld [vmem:[#allocation7 + $0x24] sm:$0xf]
    %v118 = vld [vmem:[#allocation7 + $0x28] sm:$0xf]
    %v119 = vld [vmem:[#allocation7 + $0x2c] sm:$0xf]
    %v120 = vld [vmem:[#allocation7 + $0x30] sm:$0xf]
    %v121 = vld [vmem:[#allocation7 + $0x34] sm:$0xf]
    %v122 = vld [vmem:[#allocation7 + $0x38] sm:$0xf]
    %v123 = vld [vmem:[#allocation7 + $0x3c] sm:$0xf]
    %v124 = vld [vmem:[%s4] sm:$0x1]
    %v126 = vperm.slane %v124, 0
    %v144 = vunpack.c.l.b16 %v108
    %v145 = vunpack.c.l.b16 %v109
    %v146 = vunpack.c.l.b16 %v110
    %v147 = vunpack.c.l.b16 %v111
    %v148 = vunpack.c.l.b16 %v112
    %v149 = vunpack.c.l.b16 %v113
    %v150 = vunpack.c.l.b16 %v114
    %v151 = vunpack.c.l.b16 %v115
    %v152 = vunpack.c.l.b16 %v116
    %v153 = vunpack.c.l.b16 %v117
    %v154 = vunpack.c.l.b16 %v118
    %v155 = vunpack.c.l.b16 %v119
    %v156 = vunpack.c.l.b16 %v120
    %v157 = vunpack.c.l.b16 %v121
    %v158 = vunpack.c.l.b16 %v122
    %v159 = vunpack.c.l.b16 %v123
    %v160 = vpack.c.b16 %v145, %v144
    %v161 = vpack.c.b16 %v147, %v146
    %v162 = vpack.c.b16 %v149, %v148
    %v163 = vpack.c.b16 %v151, %v150
    %v164 = vpack.c.b16 %v153, %v152
    %v165 = vpack.c.b16 %v155, %v154
    %v166 = vpack.c.b16 %v157, %v156
    %v167 = vpack.c.b16 %v159, %v158
    %176 = vmatpush.bf16.msra.mxu0 %v167
    %177 = vmatpush.bf16.msra.mxu0 %v166
    %178 = vmatpush.bf16.msra.mxu0 %v165
    %179 = vmatpush.bf16.msra.mxu0 %v164
    %180 = vmatpush.bf16.msra.mxu0 %v163
    %181 = vmatpush.bf16.msra.mxu0 %v162
    %182 = vmatpush.bf16.msra.mxu0 %v161
    %183 = vmatpush.bf16.msra.mxu0 %v160
    %184 = vmatmul.bf16.gmra.mxu0 %v107
    %v185 = vpop.f32.mrf.mxu0
    %v186 = vadd.f32 %v126, %v185
    %v187 = vpop.f32.mrf.mxu0
    %188 = vdwg.mxu0
    %v189 = vpack.c.bf16 %v186, %v186
    %190 = vst [vmem:[#allocation8] sm:$0xf] %v189
    // Predicated region
    $region34: #{tpu_custom_call.1} parent=1 // pred_check
      _
    $region35: #{tpu_custom_call.1} parent=1 // pred_check_branch
      %192 = sbr.rel (0) target = $region37
    $region36: #{tpu_custom_call.1} parent=1 // pred_region
      %194 = vsyncadd [#allocation4], 0
      %s196 = sshll.u32 [#allocation8], 4
      %s197 = int_to_ptr.vmem [resolvable:$true] %s196
      %s198 = sshll.u32 %s5, 4
      %s199 = int_to_ptr.hbm [resolvable:$true] %s198
      %201 = dma.vmem_to_hbm [thread:$0]  %s197, 64, %s199, [#allocation4]
    $region37: #{tpu_custom_call.1} parent=1 // pred_fallthru
      _
    // Predicated region
    $region38: #{tpu_custom_call.1} parent=1 // pred_check
      _
    $region39: #{tpu_custom_call.1} parent=1 // pred_check_branch
      %203 = sbr.rel (0) target = $region41
    $region40: #{tpu_custom_call.1} parent=1 // pred_region
      %205 = dma.done [#allocation4], 64
    $region41: #{tpu_custom_call.1} parent=1 // pred_fallthru
      _
    %206 = vsyncpa [#allocation3], 1
    %207 = vsyncpa [#allocation6], 1
    %208 = vsyncpa [#allocation4], 1

</llo_original>
